<compile_context>
chip_gen: v7x
topology: tpu7x:2x2x1
jax: 0.10.0
libtpu: 0.0.40
codegen_flags: <defaults>
</compile_context>

<pallas_src>
import jax
import jax.numpy as jnp
from jax.experimental import pallas as pl
from jax.experimental.pallas import tpu as pltpu

_LANES = 128              # vreg lane width: full, unmasked 128-lane stores
_TINY_ELEMS = 1 << 18     # below ~256K elems, fused XLA is strictly better
_MAX_BLOCK_ROWS = 8192    # 8192 x 128 f32 = 4 MiB per block
_MIN_GRID_STEPS = 4       # keep >=4 steps: pipelining + 2-TC balance on v7x


def _round_up(v: int, m: int) -> int:
    return (v + m - 1) // m * m


def _sublane_multiple(dtype) -> int:
    # Packed-tile constraint: second-minor block dim must be a multiple of
    # 8 (4-byte), 16 (2-byte) or 32 (1-byte) elements.
    return max(8, 32 // jnp.dtype(dtype).itemsize)


def _hardsigmoid_jnp(x: jax.Array) -> jax.Array:
    return jnp.clip(x * (1.0 / 6.0) + 0.5, 0.0, 1.0).astype(x.dtype)


def _hardsigmoid_kernel(x_ref, o_ref):
    x = x_ref[...]
    # clamp(x/6 + 0.5, 0, 1); pure VPU work, one unmasked store per vreg.
    o_ref[...] = jnp.clip(x * (1.0 / 6.0) + 0.5, 0.0, 1.0).astype(o_ref.dtype)


def hardsigmoid(x: jax.Array, *, block_rows: int = _MAX_BLOCK_ROWS,
                force_pallas: bool = False) -> jax.Array:
    """Elementwise Hardsigmoid via a lane-dense, row-tiled Pallas TPU kernel."""
    orig_shape = x.shape
    n = x.size
    if n == 0:
        return x

    lane_aligned = (n % _LANES) == 0

    if not force_pallas and (n < _TINY_ELEMS or not lane_aligned):
        # Fused XLA elementwise is already near HBM roofline; Pallas only wins
        # once launch overhead amortizes AND no pad/slice copies are needed.
        return _hardsigmoid_jnp(x)

    if not lane_aligned:
        # Forced Pallas on a ragged size: aligned prefix in-kernel, tiny tail
        # fused. Avoids a full-tensor pad copy.
        flat = x.reshape(-1)
        n_main = (n // _LANES) * _LANES
        if n_main == 0:
            return _hardsigmoid_jnp(x)
        main = hardsigmoid(flat[:n_main], block_rows=block_rows,
                           force_pallas=True)
        tail = _hardsigmoid_jnp(flat[n_main:])
        return jnp.concatenate([main, tail]).reshape(orig_shape)

    rows = n // _LANES
    x2 = x.reshape(rows, _LANES)            # layout-preserving, no copy

    sub = _sublane_multiple(x.dtype)
    itemsize = jnp.dtype(x.dtype).itemsize

    # Block height: dtype-aware sublane multiple, capped at ~4 MiB, and small
    # enough for >= _MIN_GRID_STEPS grid steps when the input permits.
    tm = _round_up(pl.cdiv(rows, _MIN_GRID_STEPS), sub)
    tm = min(tm, _round_up(block_rows, sub))
    tm = min(tm, _round_up(rows, sub))
    tm = max(tm, sub)

    grid = (pl.cdiv(rows, tm),)             # ragged last block: masked store

    block_bytes = tm * _LANES * itemsize
    # ~2x the live double-buffered footprint (2 in + 2 out blocks), <= 32 MiB.
    vmem_limit = int(min(32 << 20, max(8 << 20, 8 * block_bytes)))

    out2 = pl.pallas_call(
        _hardsigmoid_kernel,
        out_shape=jax.ShapeDtypeStruct((rows, _LANES), x.dtype),
        grid_spec=pltpu.PrefetchScalarGridSpec(
            num_scalar_prefetch=0,
            grid=grid,
            in_specs=[pl.BlockSpec((tm, _LANES), lambda i: (i, 0))],
            out_specs=pl.BlockSpec((tm, _LANES), lambda i: (i, 0)),
        ),
        compiler_params=pltpu.CompilerParams(
            dimension_semantics=("parallel",),   # no reduction; v7x 2-TC shard
            vmem_limit_bytes=vmem_limit,
        ),
        cost_estimate=pl.CostEstimate(
            flops=4 * n,                         # mul, add, max, min
            transcendentals=0,
            bytes_accessed=2 * n * itemsize,
        ),
    )(x2)

    return out2.reshape(orig_shape)


def _ref_hardsigmoid(x):
    return jnp.clip(x / 6.0 + 0.5, 0.0, 1.0)


if __name__ == "__main__":
    key = jax.random.PRNGKey(0)
    k0, k1, k2 = jax.random.split(key, 3)

    # 1) Rank-2 f32 input consistent with Hardsigmoid_F32_R2 (small shape).
    #    Tiny -> fused XLA fast path.
    x_small = jax.random.normal(k0, (8, 32), dtype=jnp.float32) * 4.0
    ref_small = _ref_hardsigmoid(x_small)
    out_small = jax.block_until_ready(hardsigmoid(x_small))
    assert out_small.shape == x_small.shape and out_small.dtype == x_small.dtype
    assert jnp.allclose(out_small, ref_small, atol=1e-6), "fused path mismatch"

    # 2) Lane-aligned rank-2 shape forced through the Pallas kernel
    #    (rows=256, tm=64 -> 4 pipelined grid steps, no padding).
    x_mid = jax.random.normal(k1, (256, 128), dtype=jnp.float32) * 4.0
    out_mid = jax.block_until_ready(hardsigmoid(x_mid, force_pallas=True))
    assert out_mid.shape == x_mid.shape and out_mid.dtype == x_mid.dtype
    assert jnp.allclose(out_mid, _ref_hardsigmoid(x_mid), atol=1e-6), \
        "pallas path mismatch"

    # 3) Ragged (non-multiple-of-128) size forced through Pallas:
    #    aligned-prefix kernel (with a masked ragged last block) + fused tail.
    x_rag = jax.random.normal(k2, (300, 200), dtype=jnp.float32) * 4.0
    out_rag = jax.block_until_ready(hardsigmoid(x_rag, force_pallas=True))
    assert out_rag.shape == x_rag.shape and out_rag.dtype == x_rag.dtype
    assert jnp.allclose(out_rag, _ref_hardsigmoid(x_rag), atol=1e-6), \
        "ragged path mismatch"

    print("KERNEL_OK")
</pallas_src>

<mosaic_0001>
module attributes {stable_mosaic.version = 11 : i64} {
  func.func @_hardsigmoid_kernel(%arg0: i32, %arg1: memref<64x128xf32, #tpu.memory_space<vmem>>, %arg2: memref<64x128xf32, #tpu.memory_space<vmem>>) attributes {dimension_semantics = [#tpu.dimension_semantics<parallel>], iteration_bounds = array<i64: 4>, scalar_prefetch = 0 : i64, scratch_operands = 0 : i64, tpu.core_type = #tpu.core_type<tc>, window_params = [{transform_indices = @transform_0, window_bounds = array<i64: 64, 128>}, {transform_indices = @transform_1, window_bounds = array<i64: 64, 128>}]} {
    %c0 = arith.constant 0 : index
    %c0_0 = arith.constant 0 : index
    %0 = vector.load %arg1[%c0, %c0_0] : memref<64x128xf32, #tpu.memory_space<vmem>>, vector<64x128xf32>
    %cst = arith.constant 0.166666672 : f32
    %1 = vector.broadcast %cst : f32 to vector<64x128xf32>
    %2 = arith.mulf %0, %1 : vector<64x128xf32>
    %cst_1 = arith.constant 5.000000e-01 : f32
    %3 = vector.broadcast %cst_1 : f32 to vector<64x128xf32>
    %4 = arith.addf %2, %3 : vector<64x128xf32>
    %cst_2 = arith.constant 0.000000e+00 : f32
    %cst_3 = arith.constant 1.000000e+00 : f32
    %5 = vector.broadcast %cst_2 : f32 to vector<64x128xf32>
    %6 = arith.maximumf %5, %4 : vector<64x128xf32>
    %7 = vector.broadcast %cst_3 : f32 to vector<64x128xf32>
    %8 = arith.minimumf %7, %6 : vector<64x128xf32>
    %c0_4 = arith.constant 0 : index
    %c0_5 = arith.constant 0 : index
    %9 = vector.load %arg2[%c0_4, %c0_5] : memref<64x128xf32, #tpu.memory_space<vmem>>, vector<64x128xf32>
    tpu.vector_store %arg2[%c0_4, %c0_5], %8 {strides = array<i32>} : memref<64x128xf32, #tpu.memory_space<vmem>>, vector<64x128xf32>,
    return
  }
  func.func @transform_0(%arg0: i32) -> (i32, i32) {
    %c0_i32 = arith.constant 0 : i32
    %c0_i32_0 = arith.constant 0 : i32
    return %arg0, %c0_i32 : i32, i32
  }
  func.func @transform_1(%arg0: i32) -> (i32, i32) {
    %c0_i32 = arith.constant 0 : i32
    %c0_i32_0 = arith.constant 0 : i32
    return %arg0, %c0_i32 : i32, i32
  }
}

</mosaic_0001>

<llo_original>
// kernel: tpu_custom_call.1
$region0: #{tpu_custom_call.1}
  #allocation0 [shape = 'u32[]', space=smem, size = 0x4, offset = 0x4, fixed_abs, tag = 'smem constant byte address 0x4 - core index']
  #allocation1 [shape = 'u32[144,128]{1,0:T(1,128)}', space=vmem, size = 0x12000, scoped, tag = 'internal scratch']
  %s0 = inlined_call_operand.hbm [shape: f32[256,128], index: 0, kind: input, shape index: {}]
  %s1 = inlined_call_operand.hbm [shape: f32[256,128], index: 1, kind: output, shape index: {}]
  %s2 = sld [smem:[#allocation0]]
  $region41: #{tpu_custom_call.1} parent=0
    _
  %s4 = ssub.s32 1, %s2
  %s5 = scalar_select 0, %s4, %s2
  $region1: #{tpu_custom_call.1} parent=0
    #allocation2 [shape = 'u8[65536]{0}', space=vmem, size = 0x10000, scoped, tag = 'input window, operand 0']
    #allocation3 [shape = 's32[2]{0}', space=sflag, size = 0x8, scoped, tag = 'scoped memory for tpu_custom_call.1']
    #allocation4 [shape = 's32[2]{0}', space=sflag, size = 0x8, scoped, tag = 'scoped memory for tpu_custom_call.1']
    #allocation5 [shape = 'u8[65536]{0}', space=vmem, size = 0x10000, scoped, tag = 'output window, operand 0']
    %6 = vsyncpa [#allocation3], 0
    %s7 = scalar_lea.sflag [#allocation3], 1
    %8 = vsyncpa %s7, 0
    %9 = vsyncpa [#allocation4], 0
    %s10 = scalar_lea.sflag [#allocation4], 1
    %11 = vsyncpa %s10, 0
    loop: start=0, step=1, limit=6
    $region2: #{tpu_custom_call.1} parent=1 // loop_pre_header
      _
    $region3: #{tpu_custom_call.1} parent=1 // loop_header
      %s13 = sphi 0, %s17
      %p14 = scmp.ge.s32.totalorder %s13, 6
      %s23 = sphi 0, %s25
      %s26 = sphi 0, %s23
      %s27 = sphi 0, %s26
      %s43 = sphi 0, %s27
      %s49 = sphi 0, %s51
      %s52 = sphi 0, %s49
      %s53 = sphi 0, %s52
      %s69 = sphi 0, %s53
    $region4: #{tpu_custom_call.1} parent=1 // loop_header_branch
      %16 = sbr.rel (%p14) target = $region8
    $region5: #{tpu_custom_call.1} parent=1 // loop_body
      %s18 = ssub.s32 %s13, 1
      %s19 = ssub.s32 %s13, 2
      %s20 = sadd.s32 %s13, 1
      %s21 = ssub.s32 %s13, %s20
      %p22 = scmp.eq.s32.totalorder %s21, 0
      %s24 = sadd.s32 %s23, 1
      %s25 = scalar_select %p22, %s23, %s24
      %p28 = pneg %p22
      %p29 = scmp.eq.s32.totalorder %s13, 3
      %p30 = por %p28, %p29
      %p31 = scmp.ne.s32.totalorder %s23, %s26
      %p32 = scmp.eq.s32.totalorder %s13, 0
      %p33 = por %p31, %p32
      %p34 = scmp.ne.s32.totalorder %s23, %s26
      %p35 = scmp.eq.s32.totalorder %s18, 3
      %p36 = por %p34, %p35
      %p37 = scmp.ne.s32.totalorder %s26, %s27
      %p38 = scmp.eq.s32.totalorder %s18, 0
      %p39 = por %p37, %p38
      %p40 = scmp.ne.s32.totalorder %s26, %s27
      %p41 = scmp.eq.s32.totalorder %s19, 3
      %p42 = por %p40, %p41
      %p44 = scmp.ne.s32.totalorder %s27, %s43
      %p45 = scmp.eq.s32.totalorder %s19, 0
      %p46 = por %p44, %p45
      %s47 = ssub.s32 %s13, %s20
      %p48 = scmp.eq.s32.totalorder %s47, 0
      %s50 = sadd.s32 %s49, 1
      %s51 = scalar_select %p48, %s49, %s50
      %p54 = pneg %p48
      %p55 = scmp.eq.s32.totalorder %s13, 3
      %p56 = por %p54, %p55
      %p57 = scmp.ne.s32.totalorder %s49, %s52
      %p58 = scmp.eq.s32.totalorder %s13, 0
      %p59 = por %p57, %p58
      %p60 = scmp.ne.s32.totalorder %s49, %s52
      %p61 = scmp.eq.s32.totalorder %s18, 3
      %p62 = por %p60, %p61
      %p63 = scmp.ne.s32.totalorder %s52, %s53
      %p64 = scmp.eq.s32.totalorder %s18, 0
      %p65 = por %p63, %p64
      %p66 = scmp.ne.s32.totalorder %s52, %s53
      %p67 = scmp.eq.s32.totalorder %s19, 3
      %p68 = por %p66, %p67
      %p70 = scmp.ne.s32.totalorder %s53, %s69
      %p71 = scmp.eq.s32.totalorder %s19, 0
      %p72 = por %p70, %p71
      %p73 = scmp.le.s32.totalorder 1, %s13
      %p74 = scmp.lt.s32.totalorder %s13, 5
      %p75 = pnand %p73, %p74
      %p76 = pneg %p75
      // Predicated region
      $region9: #{tpu_custom_call.1} parent=5 // pred_check
        _
      $region10: #{tpu_custom_call.1} parent=5 // pred_check_branch
        %78 = sbr.rel (%p75) target = $region12
      $region11: #{tpu_custom_call.1} parent=5 // pred_region
        %s79 = ssub.s32 %s13, 1
      $region12: #{tpu_custom_call.1} parent=5 // pred_fallthru
        _
      %p80 = scmp.lt.s32.totalorder %s13, 4
      // Predicated region
      $region13: #{tpu_custom_call.1} parent=5 // pred_check
        %p81 = pneg %p80
      $region14: #{tpu_custom_call.1} parent=5 // pred_check_branch
        %83 = sbr.rel (%p81) target = $region16
      $region15: #{tpu_custom_call.1} parent=5 // pred_region
        // Predicated region
        $region17: #{tpu_custom_call.1} parent=15 // pred_check
          %p84 = pneg %p33
        $region18: #{tpu_custom_call.1} parent=15 // pred_check_branch
          %86 = sbr.rel (%p84) target = $region20
        $region19: #{tpu_custom_call.1} parent=15 // pred_region
          %s87 = sand.u32 %s23, 1
          %s88 = scalar_lea.sflag [#allocation3], %s87
          %s89 = sand.u32 %s23, 1
          %s90 = smul.addr %s89, 64
          %s91 = scalar_lea.vmem [#allocation2], %s90
          %s92 = smul.u32 8, %s13
          %s94 = ssub.s32 1024, 1024
          %95 = vsyncadd %s88, %s94
          %s96 = smul.addr %s92, 128
          %s97 = scalar_lea.hbm %s0, %s96
          %s98 = sshll.u32 %s91, 4
          %s99 = int_to_ptr.vmem [resolvable:$true] %s98
          %104 = dma.hbm_to_vmem [thread:$0]  %s97, 1024, %s99, %s88, 128, 128, 8
        $region20: #{tpu_custom_call.1} parent=15 // pred_fallthru
          _
      $region16: #{tpu_custom_call.1} parent=5 // pred_fallthru
        _
      %p105 = scmp.le.s32.totalorder 1, %s13
      %p106 = scmp.lt.s32.totalorder %s13, 5
      %p107 = pnand %p105, %p106
      %p108 = pneg %p107
      // Predicated region
      $region21: #{tpu_custom_call.1} parent=5 // pred_check
        _
      $region22: #{tpu_custom_call.1} parent=5 // pred_check_branch
        %110 = sbr.rel (%p107) target = $region24
      $region23: #{tpu_custom_call.1} parent=5 // pred_region
        %s111 = ssub.s32 %s13, 1
        %s112 = sand.u32 %s26, 1
        %s113 = scalar_lea.sflag [#allocation3], %s112
        %s114 = sand.u32 %s26, 1
        %s115 = smul.addr %s114, 64
        %s116 = scalar_lea.vmem [#allocation2], %s115
        // Predicated region
        $region25: #{tpu_custom_call.1} parent=23 // pred_check
          %p117 = pneg %p39
        $region26: #{tpu_custom_call.1} parent=23 // pred_check_branch
          %119 = sbr.rel (%p117) target = $region28
        $region27: #{tpu_custom_call.1} parent=23 // pred_region
          %120 = dma.done %s113, 1024
        $region28: #{tpu_custom_call.1} parent=23 // pred_fallthru
          _
        %s121 = sand.u32 %s26, 1
        %s122 = scalar_lea.sflag [#allocation3], %s121
        %s123 = sand.u32 %s26, 1
        %s124 = smul.addr %s123, 64
        %s125 = scalar_lea.vmem [#allocation2], %s124
        %p126 = pneg %p39
        %p127 = pneg %p36
        %p128 = pneg %p65
        %p129 = pneg %p62
        %s130 = sand.u32 %s52, 1
        %s131 = scalar_lea.sflag [#allocation4], %s130
        %s132 = sand.u32 %s52, 1
        %s133 = smul.addr %s132, 64
        %s134 = scalar_lea.vmem [#allocation5], %s133
        %s135 = smul.u32 8, %s18
        %s136 = smul.u32 8, %s18
        %v137 = vld [vmem:[%s116] sm:$0xff]
        %v138 = vld [vmem:[%s116 + $0x8] sm:$0xff]
        %v139 = vld [vmem:[%s116 + $0x10] sm:$0xff]
        %v140 = vld [vmem:[%s116 + $0x18] sm:$0xff]
        %v141 = vld [vmem:[%s116 + $0x20] sm:$0xff]
        %v142 = vld [vmem:[%s116 + $0x28] sm:$0xff]
        %v143 = vld [vmem:[%s116 + $0x30] sm:$0xff]
        %v144 = vld [vmem:[%s116 + $0x38] sm:$0xff]
        %v145 = vmul.f32 %v137, 0.16666667
        %v146 = vmul.f32 %v138, 0.16666667
        %v147 = vmul.f32 %v139, 0.16666667
        %v148 = vmul.f32 %v140, 0.16666667
        %v149 = vmul.f32 %v141, 0.16666667
        %v150 = vmul.f32 %v142, 0.16666667
        %v151 = vmul.f32 %v143, 0.16666667
        %v152 = vmul.f32 %v144, 0.16666667
        %v153 = vadd.f32 %v145, 0.5
        %v154 = vadd.f32 %v146, 0.5
        %v155 = vadd.f32 %v147, 0.5
        %v156 = vadd.f32 %v148, 0.5
        %v157 = vadd.f32 %v149, 0.5
        %v158 = vadd.f32 %v150, 0.5
        %v159 = vadd.f32 %v151, 0.5
        %v160 = vadd.f32 %v152, 0.5
        %v161 = vmax.f32 %v153, 0.0
        %v162 = vmax.f32 %v154, 0.0
        %v163 = vmax.f32 %v155, 0.0
        %v164 = vmax.f32 %v156, 0.0
        %v165 = vmax.f32 %v157, 0.0
        %v166 = vmax.f32 %v158, 0.0
        %v167 = vmax.f32 %v159, 0.0
        %v168 = vmax.f32 %v160, 0.0
        %v169 = vmin.f32 %v161, 1.0
        %v170 = vmin.f32 %v162, 1.0
        %v171 = vmin.f32 %v163, 1.0
        %v172 = vmin.f32 %v164, 1.0
        %v173 = vmin.f32 %v165, 1.0
        %v174 = vmin.f32 %v166, 1.0
        %v175 = vmin.f32 %v167, 1.0
        %v176 = vmin.f32 %v168, 1.0
        %177 = vst [vmem:[%s134] sm:$0xff] %v169
        %178 = vst [vmem:[%s134 + $0x8] sm:$0xff] %v170
        %179 = vst [vmem:[%s134 + $0x10] sm:$0xff] %v171
        %180 = vst [vmem:[%s134 + $0x18] sm:$0xff] %v172
        %181 = vst [vmem:[%s134 + $0x20] sm:$0xff] %v173
        %182 = vst [vmem:[%s134 + $0x28] sm:$0xff] %v174
        %183 = vst [vmem:[%s134 + $0x30] sm:$0xff] %v175
        %184 = vst [vmem:[%s134 + $0x38] sm:$0xff] %v176
        %s185 = sand.u32 %s52, 1
        %s186 = scalar_lea.sflag [#allocation4], %s185
        %s187 = sand.u32 %s52, 1
        %s188 = smul.addr %s187, 64
        %s189 = scalar_lea.vmem [#allocation5], %s188
        // Predicated region
        $region29: #{tpu_custom_call.1} parent=23 // pred_check
          %p190 = pneg %p62
        $region30: #{tpu_custom_call.1} parent=23 // pred_check_branch
          %192 = sbr.rel (%p190) target = $region32
        $region31: #{tpu_custom_call.1} parent=23 // pred_region
          %s193 = smul.u32 8, %s18
          %s195 = ssub.s32 1024, 1024
          %196 = vsyncadd %s186, %s195
          %s197 = smul.addr %s193, 128
          %s198 = scalar_lea.hbm %s1, %s197
          %s199 = sshll.u32 %s189, 4
          %s200 = int_to_ptr.vmem [resolvable:$true] %s199
          %205 = dma.vmem_to_hbm [thread:$0]  %s200, 1024, %s198, %s186, 128, 128, 8
        $region32: #{tpu_custom_call.1} parent=23 // pred_fallthru
          _
      $region24: #{tpu_custom_call.1} parent=5 // pred_fallthru
        _
      %p206 = scmp.le.s32.totalorder 2, %s13
      // Predicated region
      $region33: #{tpu_custom_call.1} parent=5 // pred_check
        %p207 = pneg %p206
      $region34: #{tpu_custom_call.1} parent=5 // pred_check_branch
        %209 = sbr.rel (%p207) target = $region36
      $region35: #{tpu_custom_call.1} parent=5 // pred_region
        %s210 = ssub.s32 %s13, 2
        // Predicated region
        $region37: #{tpu_custom_call.1} parent=35 // pred_check
          %p211 = pneg %p68
        $region38: #{tpu_custom_call.1} parent=35 // pred_check_branch
          %213 = sbr.rel (%p211) target = $region40
        $region39: #{tpu_custom_call.1} parent=35 // pred_region
          %s214 = sand.u32 %s53, 1
          %s215 = scalar_lea.sflag [#allocation4], %s214
          %s216 = sand.u32 %s53, 1
          %s217 = smul.addr %s216, 64
          %s218 = scalar_lea.vmem [#allocation5], %s217
          %219 = dma.done %s215, 1024
        $region40: #{tpu_custom_call.1} parent=35 // pred_fallthru
          _
      $region36: #{tpu_custom_call.1} parent=5 // pred_fallthru
        _
    $region6: #{tpu_custom_call.1} parent=1 // loop_footer
      %s17 = sadd.s32 1, %s13
    $region7: #{tpu_custom_call.1} parent=1 // loop_footer_branch
      %12 = sbr.rel target = $region3
    $region8: #{tpu_custom_call.1} parent=1 // loop_exit
      _
    %220 = vsyncpa [#allocation3], 1
    %s221 = scalar_lea.sflag [#allocation3], 1
    %222 = vsyncpa %s221, 1
    %223 = vsyncpa [#allocation4], 1
    %s224 = scalar_lea.sflag [#allocation4], 1
    %225 = vsyncpa %s224, 1

</llo_original>
